<compile_context>
chip_gen: v6e
topology: v6e:2x2x1
jax: 0.10.0
libtpu: 0.0.40
codegen_flags: <defaults>
</compile_context>

<pallas_src>
import jax
import jax.numpy as jnp
from jax.experimental import pallas as pl
from jax.experimental.pallas import tpu as pltpu

IN_F = 2
HID = 32
OUT_F = 1


def mlp_kernel(xT_ref, w1_ref, b1_ref, w2_ref, b2_ref, o_ref):
    xT = xT_ref[...]                     # (2, TB)   features x batch(lanes)
    w1 = w1_ref[...]                     # (32, 2)   PyTorch (out, in) layout
    # fc1: contraction depth 2 -> two VPU FMAs, skip the MXU entirely.
    h = w1[:, 0:1] * xT[0:1, :] + w1[:, 1:2] * xT[1:2, :]   # (32, TB)
    h = h + b1_ref[...]                  # (32, 1) broadcast over lanes
    h = jnp.maximum(h, 0.0)              # ReLU on the VPU
    # fc2: single output feature -> multiply + sublane reduce (no MXU).
    y = jnp.sum(h * w2_ref[...], axis=0, keepdims=True)     # (1, TB)
    o_ref[...] = (y + b2_ref[0, 0]).astype(o_ref.dtype)     # scalar bias from SMEM


def simple_mlp_forward(x, w1, b1, w2, b2):
    """x: (B, 2) f32. Weights in PyTorch layout: w1 (32, 2), b1 (32,), w2 (1, 32), b2 (1,)."""
    B = x.shape[0]
    # Pad the batch up to a lane multiple and pick the largest tile that divides it.
    B_pad = pl.cdiv(B, 128) * 128
    TB = next(t for t in (1024, 512, 256, 128) if B_pad % t == 0)
    grid = (B_pad // TB,)

    xT = jnp.zeros((IN_F, B_pad), x.dtype).at[:, :B].set(x.T)   # lane-dense input
    b1_col = b1.reshape(HID, 1)
    w2_col = w2.reshape(HID, 1)          # (1, 32) -> (32, 1) column
    b2_sc = b2.reshape(1, 1)

    yT = pl.pallas_call(
        mlp_kernel,
        out_shape=jax.ShapeDtypeStruct((OUT_F, B_pad), jnp.float32),
        grid=grid,
        in_specs=[
            pl.BlockSpec((IN_F, TB), lambda i: (0, i)),          # streamed per batch tile
            pl.BlockSpec((HID, IN_F), lambda i: (0, 0)),         # resident weights
            pl.BlockSpec((HID, 1), lambda i: (0, 0)),
            pl.BlockSpec((HID, 1), lambda i: (0, 0)),
            pl.BlockSpec(memory_space=pltpu.MemorySpace.SMEM),   # scalar bias b2
        ],
        out_specs=pl.BlockSpec((OUT_F, TB), lambda i: (0, i)),   # lane-dense output
        compiler_params=pltpu.CompilerParams(
            dimension_semantics=("parallel",),
        ),
    )(xT, w1, b1_col, w2_col, b2_sc)

    return yT[:, :B].T                   # back to PyTorch (B, 1) layout


def init_params(key):
    # nn.Linear-style uniform(-1/sqrt(fan_in), 1/sqrt(fan_in)), PyTorch (out, in) layout.
    k1, k2, k3, k4 = jax.random.split(key, 4)
    bound1 = 1.0 / jnp.sqrt(float(IN_F))
    bound2 = 1.0 / jnp.sqrt(float(HID))
    w1 = jax.random.uniform(k1, (HID, IN_F), jnp.float32, -bound1, bound1)
    b1 = jax.random.uniform(k2, (HID,), jnp.float32, -bound1, bound1)
    w2 = jax.random.uniform(k3, (OUT_F, HID), jnp.float32, -bound2, bound2)
    b2 = jax.random.uniform(k4, (OUT_F,), jnp.float32, -bound2, bound2)
    return w1, b1, w2, b2


def reference(x, w1, b1, w2, b2):
    # Same semantics as the PyTorch forward: fc2(relu(fc1(x)))
    return jnp.maximum(x @ w1.T + b1, 0.0) @ w2.T + b2


if __name__ == "__main__":
    key = jax.random.PRNGKey(0)
    k_x, k_p, k_x2 = jax.random.split(key, 3)
    w1, b1, w2, b2 = init_params(k_p)

    # Small-batch case (matches the original homework usage).
    B = 8
    x = jax.random.normal(k_x, (B, IN_F), jnp.float32)
    out = jax.block_until_ready(simple_mlp_forward(x, w1, b1, w2, b2))
    ref = reference(x, w1, b1, w2, b2)
    assert out.shape == (B, OUT_F)
    assert jnp.allclose(out, ref, atol=1e-5, rtol=1e-5)

    # Multi-tile grid path (exercises batch tiling with resident weights).
    B2 = 384
    x2 = jax.random.normal(k_x2, (B2, IN_F), jnp.float32)
    out2 = jax.block_until_ready(simple_mlp_forward(x2, w1, b1, w2, b2))
    ref2 = reference(x2, w1, b1, w2, b2)
    assert out2.shape == (B2, OUT_F)
    assert jnp.allclose(out2, ref2, atol=1e-5, rtol=1e-5)

    print("KERNEL_OK")
</pallas_src>

<mosaic_0001>
module attributes {stable_mosaic.version = 11 : i64} {
  func.func @mlp_kernel(%arg0: i32, %arg1: memref<2x128xf32, #tpu.memory_space<vmem>>, %arg2: memref<32x2xf32, #tpu.memory_space<vmem>>, %arg3: memref<32x1xf32, #tpu.memory_space<vmem>>, %arg4: memref<32x1xf32, #tpu.memory_space<vmem>>, %arg5: memref<1x1xf32, #tpu.memory_space<smem>>, %arg6: memref<1x128xf32, #tpu.memory_space<vmem>>) attributes {dimension_semantics = [#tpu.dimension_semantics<parallel>], iteration_bounds = array<i64: 1>, scalar_prefetch = 0 : i64, scratch_operands = 0 : i64, tpu.core_type = #tpu.core_type<tc>, window_params = [{transform_indices = @transform_0, window_bounds = array<i64: 2, 128>}, {pipeline_mode = #tpu.pipeline_mode<synchronous>, transform_indices = @transform_1, window_bounds = array<i64: 32, 2>}, {pipeline_mode = #tpu.pipeline_mode<synchronous>, transform_indices = @transform_2, window_bounds = array<i64: 32, 1>}, {pipeline_mode = #tpu.pipeline_mode<synchronous>, transform_indices = @transform_3, window_bounds = array<i64: 32, 1>}, {transform_indices = @transform_4, window_bounds = array<i64: 1, 1>}, {transform_indices = @transform_5, window_bounds = array<i64: 1, 128>}]} {
    %c0 = arith.constant 0 : index
    %c0_0 = arith.constant 0 : index
    %0 = vector.load %arg1[%c0, %c0_0] : memref<2x128xf32, #tpu.memory_space<vmem>>, vector<2x128xf32>
    %c0_1 = arith.constant 0 : index
    %c0_2 = arith.constant 0 : index
    %1 = vector.load %arg2[%c0_1, %c0_2] : memref<32x2xf32, #tpu.memory_space<vmem>>, vector<32x2xf32>
    %2 = vector.extract_strided_slice %1 {offsets = [0, 0], sizes = [32, 1], strides = [1, 1]} : vector<32x2xf32> to vector<32x1xf32>
    %3 = vector.extract_strided_slice %0 {offsets = [0, 0], sizes = [1, 128], strides = [1, 1]} : vector<2x128xf32> to vector<1x128xf32>
    %4 = vector.broadcast %2 : vector<32x1xf32> to vector<32x128xf32>
    %5 = vector.broadcast %3 : vector<1x128xf32> to vector<32x128xf32>
    %6 = arith.mulf %4, %5 : vector<32x128xf32>
    %7 = vector.extract_strided_slice %1 {offsets = [0, 1], sizes = [32, 1], strides = [1, 1]} : vector<32x2xf32> to vector<32x1xf32>
    %8 = vector.extract_strided_slice %0 {offsets = [1, 0], sizes = [1, 128], strides = [1, 1]} : vector<2x128xf32> to vector<1x128xf32>
    %9 = vector.broadcast %7 : vector<32x1xf32> to vector<32x128xf32>
    %10 = vector.broadcast %8 : vector<1x128xf32> to vector<32x128xf32>
    %11 = arith.mulf %9, %10 : vector<32x128xf32>
    %12 = arith.addf %6, %11 : vector<32x128xf32>
    %c0_3 = arith.constant 0 : index
    %c0_4 = arith.constant 0 : index
    %13 = vector.load %arg3[%c0_3, %c0_4] : memref<32x1xf32, #tpu.memory_space<vmem>>, vector<32x1xf32>
    %14 = vector.broadcast %13 : vector<32x1xf32> to vector<32x128xf32>
    %15 = arith.addf %12, %14 : vector<32x128xf32>
    %cst = arith.constant 0.000000e+00 : f32
    %16 = vector.broadcast %cst : f32 to vector<32x128xf32>
    %17 = arith.maximumf %15, %16 : vector<32x128xf32>
    %c0_5 = arith.constant 0 : index
    %c0_6 = arith.constant 0 : index
    %18 = vector.load %arg4[%c0_5, %c0_6] : memref<32x1xf32, #tpu.memory_space<vmem>>, vector<32x1xf32>
    %19 = vector.broadcast %18 : vector<32x1xf32> to vector<32x128xf32>
    %20 = arith.mulf %17, %19 : vector<32x128xf32>
    %cst_7 = arith.constant dense<0.000000e+00> : vector<128xf32>
    %21 = vector.multi_reduction <add>, %20, %cst_7 [0] : vector<32x128xf32> to vector<128xf32>
    %22 = vector.shape_cast %21 : vector<128xf32> to vector<1x128xf32>
    %c0_8 = arith.constant 0 : index
    %c0_9 = arith.constant 0 : index
    %23 = memref.load %arg5[%c0_8, %c0_9] : memref<1x1xf32, #tpu.memory_space<smem>>
    %24 = vector.broadcast %23 : f32 to vector<1x128xf32>
    %25 = arith.addf %22, %24 : vector<1x128xf32>
    %c0_10 = arith.constant 0 : index
    %c0_11 = arith.constant 0 : index
    %26 = vector.load %arg6[%c0_10, %c0_11] : memref<1x128xf32, #tpu.memory_space<vmem>>, vector<1x128xf32>
    tpu.vector_store %arg6[%c0_10, %c0_11], %25 {strides = array<i32>} : memref<1x128xf32, #tpu.memory_space<vmem>>, vector<1x128xf32>,
    return
  }
  func.func @transform_0(%arg0: i32) -> (i32, i32) {
    %c0_i32 = arith.constant 0 : i32
    %c0_i32_0 = arith.constant 0 : i32
    return %c0_i32, %arg0 : i32, i32
  }
  func.func @transform_1(%arg0: i32) -> (i32, i32) {
    %c0_i32 = arith.constant 0 : i32
    %c0_i32_0 = arith.constant 0 : i32
    %c0_i32_1 = arith.constant 0 : i32
    return %c0_i32, %c0_i32_0 : i32, i32
  }
  func.func @transform_2(%arg0: i32) -> (i32, i32) {
    %c0_i32 = arith.constant 0 : i32
    %c0_i32_0 = arith.constant 0 : i32
    %c0_i32_1 = arith.constant 0 : i32
    return %c0_i32, %c0_i32_0 : i32, i32
  }
  func.func @transform_3(%arg0: i32) -> (i32, i32) {
    %c0_i32 = arith.constant 0 : i32
    %c0_i32_0 = arith.constant 0 : i32
    %c0_i32_1 = arith.constant 0 : i32
    return %c0_i32, %c0_i32_0 : i32, i32
  }
  func.func @transform_4(%arg0: i32) -> (i32, i32) {
    %c0_i32 = arith.constant 0 : i32
    %c0_i32_0 = arith.constant 0 : i32
    %c0_i32_1 = arith.constant 0 : i32
    return %c0_i32, %c0_i32_0 : i32, i32
  }
  func.func @transform_5(%arg0: i32) -> (i32, i32) {
    %c0_i32 = arith.constant 0 : i32
    %c0_i32_0 = arith.constant 0 : i32
    return %c0_i32, %arg0 : i32, i32
  }
}

</mosaic_0001>

<llo_original>
// kernel: tpu_custom_call.1
$region0: #{tpu_custom_call.1}
  #allocation0 [shape = 'u32[]', space=smem, size = 0x4, offset = 0x4, fixed_abs, tag = 'smem constant byte address 0x4 - core index']
  #allocation1 [shape = 'u32[144,128]{1,0:T(1,128)}', space=vmem, size = 0x12000, scoped, tag = 'internal scratch']
  #allocation2 [shape = 'f32[1,1]{1,0:T(1,128)S(6)}', space=smem, size = 0x200, scoped, tag = 'scoped memory for tpu_custom_call.1']
  %s0 = inlined_call_operand.vmem [shape: f32[2,128], index: 0, kind: input, shape index: {}]
  %s1 = inlined_call_operand.vmem [shape: f32[32,2], index: 1, kind: input, shape index: {}]
  %s2 = inlined_call_operand.vmem [shape: f32[32,1], index: 2, kind: input, shape index: {}]
  %s3 = inlined_call_operand.vmem [shape: f32[32,1], index: 3, kind: input, shape index: {}]
  %s4 = inlined_call_operand.<no memory space> [shape: f32[1,1], index: 4, kind: input, shape index: {}]
  %s5 = inlined_call_operand.hbm [shape: f32[1,128], index: 5, kind: output, shape index: {}]
  %s6 = sld [smem:[#allocation0]]
  $region30: #{tpu_custom_call.1} parent=0
    _
  %s8 = ssub.s32 1, %s6
  %s9 = scalar_select 0, %s8, %s6
  %10 = sst [smem:[#allocation2]] %s4
  $region1: #{tpu_custom_call.1} parent=0
    #allocation3 [shape = 'u8[512]{0}', space=vmem, size = 0x400, scoped, tag = 'output window, operand 0, single buffered']
    #allocation4 [shape = 's32[1]{0}', space=sflag, size = 0x4, scoped, tag = 'scoped memory for tpu_custom_call.1']
    %11 = vsyncpa [#allocation4], 0
    // Predicated region
    $region2: #{tpu_custom_call.1} parent=1 // pred_check
      _
    $region3: #{tpu_custom_call.1} parent=1 // pred_check_branch
      %13 = sbr.rel (0) target = $region5
    $region4: #{tpu_custom_call.1} parent=1 // pred_region
      _
    $region5: #{tpu_custom_call.1} parent=1 // pred_fallthru
      _
    // Predicated region
    $region6: #{tpu_custom_call.1} parent=1 // pred_check
      _
    $region7: #{tpu_custom_call.1} parent=1 // pred_check_branch
      %15 = sbr.rel (0) target = $region9
    $region8: #{tpu_custom_call.1} parent=1 // pred_region
      _
    $region9: #{tpu_custom_call.1} parent=1 // pred_fallthru
      _
    // Predicated region
    $region10: #{tpu_custom_call.1} parent=1 // pred_check
      _
    $region11: #{tpu_custom_call.1} parent=1 // pred_check_branch
      %17 = sbr.rel (0) target = $region13
    $region12: #{tpu_custom_call.1} parent=1 // pred_region
      _
    $region13: #{tpu_custom_call.1} parent=1 // pred_fallthru
      _
    // Predicated region
    $region14: #{tpu_custom_call.1} parent=1 // pred_check
      _
    $region15: #{tpu_custom_call.1} parent=1 // pred_check_branch
      %19 = sbr.rel (0) target = $region17
    $region16: #{tpu_custom_call.1} parent=1 // pred_region
      _
    $region17: #{tpu_custom_call.1} parent=1 // pred_fallthru
      _
    // Predicated region
    $region18: #{tpu_custom_call.1} parent=1 // pred_check
      _
    $region19: #{tpu_custom_call.1} parent=1 // pred_check_branch
      %21 = sbr.rel (0) target = $region21
    $region20: #{tpu_custom_call.1} parent=1 // pred_region
      _
    $region21: #{tpu_custom_call.1} parent=1 // pred_fallthru
      _
    %v22 = vld [vmem:[%s0] sm:$0x3]
    %v23 = vld [vmem:[%s1] sm:$0xff]
    %v24 = vld [vmem:[%s1 + $0x8] sm:$0xff]
    %v25 = vld [vmem:[%s1 + $0x10] sm:$0xff]
    %v26 = vld [vmem:[%s1 + $0x18] sm:$0xff]
    %28 = vset.pattern.permute.xlu0 0
    %29 = vperm.xlu0 %28, %v23
    %v30 = vpop.permute.xlu0 %29
    %33 = vset.pattern.permute.xlu0 0
    %34 = vperm.xlu0 %33, %v24
    %v35 = vpop.permute.xlu0 %34
    %38 = vset.pattern.permute.xlu0 0
    %39 = vperm.xlu0 %38, %v25
    %v40 = vpop.permute.xlu0 %39
    %43 = vset.pattern.permute.xlu0 0
    %44 = vperm.xlu0 %43, %v26
    %v45 = vpop.permute.xlu0 %44
    %v47 = vlaneseq
    %v48 = vshrl.u32 %v47, 7
    %v49 = vsub.s32 0, %v48
    %v50 = vrot.slane %v22, %v49
    %v51 = vmul.f32 %v30, %v50
    %v52 = vmul.f32 %v35, %v50
    %v53 = vmul.f32 %v40, %v50
    %v54 = vmul.f32 %v45, %v50
    %55 = vset.pattern.permute.xlu0 1
    %56 = vperm.xlu0 %55, %v23
    %v57 = vpop.permute.xlu0 %56
    %59 = vset.pattern.permute.xlu0 1
    %60 = vperm.xlu0 %59, %v24
    %v61 = vpop.permute.xlu0 %60
    %63 = vset.pattern.permute.xlu0 1
    %64 = vperm.xlu0 %63, %v25
    %v65 = vpop.permute.xlu0 %64
    %67 = vset.pattern.permute.xlu0 1
    %68 = vperm.xlu0 %67, %v26
    %v69 = vpop.permute.xlu0 %68
    %v71 = vlaneseq
    %v72 = vshrl.u32 %v71, 7
    %v73 = vsub.s32 1, %v72
    %v74 = vrot.slane %v22, %v73
    %v75 = vmul.f32 %v57, %v74
    %v76 = vmul.f32 %v61, %v74
    %v77 = vmul.f32 %v65, %v74
    %v78 = vmul.f32 %v69, %v74
    %v79 = vadd.f32 %v51, %v75
    %v80 = vadd.f32 %v52, %v76
    %v81 = vadd.f32 %v53, %v77
    %v82 = vadd.f32 %v54, %v78
    %v83 = vld [vmem:[%s2] sm:$0xff]
    %v84 = vld [vmem:[%s2 + $0x8] sm:$0xff]
    %v85 = vld [vmem:[%s2 + $0x10] sm:$0xff]
    %v86 = vld [vmem:[%s2 + $0x18] sm:$0xff]
    %88 = vset.pattern.permute.xlu0 0
    %89 = vperm.xlu0 %88, %v83
    %v90 = vpop.permute.xlu0 %89
    %93 = vset.pattern.permute.xlu0 0
    %94 = vperm.xlu0 %93, %v84
    %v95 = vpop.permute.xlu0 %94
    %98 = vset.pattern.permute.xlu0 0
    %99 = vperm.xlu0 %98, %v85
    %v100 = vpop.permute.xlu0 %99
    %103 = vset.pattern.permute.xlu0 0
    %104 = vperm.xlu0 %103, %v86
    %v105 = vpop.permute.xlu0 %104
    %v107 = vadd.f32 %v79, %v90
    %v108 = vadd.f32 %v80, %v95
    %v109 = vadd.f32 %v81, %v100
    %v110 = vadd.f32 %v82, %v105
    %v111 = vmax.f32 %v107, 0.0
    %v112 = vmax.f32 %v108, 0.0
    %v113 = vmax.f32 %v109, 0.0
    %v114 = vmax.f32 %v110, 0.0
    %v115 = vld [vmem:[%s3] sm:$0xff]
    %v116 = vld [vmem:[%s3 + $0x8] sm:$0xff]
    %v117 = vld [vmem:[%s3 + $0x10] sm:$0xff]
    %v118 = vld [vmem:[%s3 + $0x18] sm:$0xff]
    %120 = vset.pattern.permute.xlu0 0
    %121 = vperm.xlu0 %120, %v115
    %v122 = vpop.permute.xlu0 %121
    %125 = vset.pattern.permute.xlu0 0
    %126 = vperm.xlu0 %125, %v116
    %v127 = vpop.permute.xlu0 %126
    %130 = vset.pattern.permute.xlu0 0
    %131 = vperm.xlu0 %130, %v117
    %v132 = vpop.permute.xlu0 %131
    %135 = vset.pattern.permute.xlu0 0
    %136 = vperm.xlu0 %135, %v118
    %v137 = vpop.permute.xlu0 %136
    %v139 = vmul.f32 %v111, %v122
    %v140 = vmul.f32 %v112, %v127
    %v141 = vmul.f32 %v113, %v132
    %v142 = vmul.f32 %v114, %v137
    %v143 = vadd.f32 %v139, %v140
    %v144 = vadd.f32 %v143, %v141
    %v145 = vadd.f32 %v144, %v142
    %v146 = vrot.slane %v145, 4
    %v147 = vadd.f32 %v145, %v146
    %v148 = vrot.slane %v147, 2
    %v149 = vadd.f32 %v147, %v148
    %v150 = vrot.slane %v149, 1
    %v151 = vadd.f32 %v149, %v150
    %s152 = sld [smem:[#allocation2]]
    %v153 = vstv %s152
    %v154 = vadd.f32 %v151, %v153
    %155 = vst [vmem:[#allocation3] sm:$0x1] %v154
    // Predicated region
    $region22: #{tpu_custom_call.1} parent=1 // pred_check
      _
    $region23: #{tpu_custom_call.1} parent=1 // pred_check_branch
      %157 = sbr.rel (0) target = $region25
    $region24: #{tpu_custom_call.1} parent=1 // pred_region
      %s159 = ssub.s32 16, 16
      %160 = vsyncadd [#allocation4], %s159
      %s162 = sshll.u32 [#allocation3], 4
      %s163 = int_to_ptr.vmem [resolvable:$true] %s162
      %165 = dma.vmem_to_hbm [thread:$0]  %s163, 16, %s5, [#allocation4]
    $region25: #{tpu_custom_call.1} parent=1 // pred_fallthru
      _
    // Predicated region
    $region26: #{tpu_custom_call.1} parent=1 // pred_check
      _
    $region27: #{tpu_custom_call.1} parent=1 // pred_check_branch
      %167 = sbr.rel (0) target = $region29
    $region28: #{tpu_custom_call.1} parent=1 // pred_region
      %168 = dma.done [#allocation4], 16
    $region29: #{tpu_custom_call.1} parent=1 // pred_fallthru
      _
    %169 = vsyncpa [#allocation4], 1

</llo_original>
